<compile_context>
chip_gen: v7x
topology: tpu7x:2x2x1
jax: 0.10.0
libtpu: 0.0.40
codegen_flags: <defaults>
</compile_context>

<pallas_src>
import functools

import jax
import jax.numpy as jnp
from jax.experimental import pallas as pl
from jax.experimental.pallas import tpu as pltpu


def _round_up(x, m):
    return ((x + m - 1) // m) * m


def _sublane_multiple(dtype):
    # Native sublane packing: 8 rows for 32-bit, 16 for 16-bit, 32 for 8-bit.
    return max(8, 32 // jnp.dtype(dtype).itemsize)


def _vmem_limit_bytes():
    """Generation-aware VMEM limit (~80% of physical, never the full chip)."""
    try:
        cap = pltpu.get_tpu_info().vmem_capacity_bytes
    except Exception:
        return None  # fall back to the compiler default
    return min(int(cap * 0.8), cap - (8 << 20))


def pad_output_params(w2, b2):
    """Zero-pad the output feature dim to a multiple of 128 (lane-dense vst).

    Call once at model init and pass the padded arrays + true out_dim to the
    forward; this avoids a per-call HBM read+write of w2.
    """
    out_dim = w2.shape[1]
    out_pad = _round_up(out_dim, 128)
    if out_pad != out_dim:
        w2 = jnp.pad(w2, ((0, 0), (0, out_pad - out_dim)))
        b2 = jnp.pad(b2, ((0, out_pad - out_dim),))
    return w2, b2, out_dim


def _mlp_kernel(x_ref, w1_ref, b1_ref, w2_ref, b2_ref, o_ref, *,
                normalize, hidden_chunk):
    x = x_ref[...]
    if normalize:
        # F.normalize(x, dim=-1): x / max(||x||_2, 1e-12)
        # == x * rsqrt(max(||x||^2, 1e-24)); rsqrt lands on the EUP slot.
        xf = x.astype(jnp.float32)
        ssq = jnp.sum(xf * xf, axis=-1, keepdims=True)
        inv = jax.lax.rsqrt(jnp.maximum(ssq, 1e-24))
        x = (xf * inv).astype(x_ref.dtype)

    hidden = w1_ref.shape[1]
    out_pad = w2_ref.shape[1]
    n_chunks = hidden // hidden_chunk

    if n_chunks <= 1:
        # Small hidden: single pass, whole (rt, hidden) intermediate is cheap.
        h = jnp.dot(x, w1_ref[...], preferred_element_type=jnp.float32)
        h = jnp.maximum(h + b1_ref[...].astype(jnp.float32), 0.0)
        h = h.astype(w2_ref.dtype)
        y = jnp.dot(h, w2_ref[...], preferred_element_type=jnp.float32)
    else:
        # Chunk the hidden dim: only (rt, hidden_chunk) is live at a time.
        def body(c, acc):
            k = c * hidden_chunk
            w1c = w1_ref[:, pl.ds(k, hidden_chunk)]
            b1c = b1_ref[:, pl.ds(k, hidden_chunk)]
            hc = jnp.dot(x, w1c, preferred_element_type=jnp.float32)
            hc = jnp.maximum(hc + b1c.astype(jnp.float32), 0.0)
            hc = hc.astype(w2_ref.dtype)
            w2c = w2_ref[pl.ds(k, hidden_chunk), :]
            return acc + jnp.dot(hc, w2c, preferred_element_type=jnp.float32)

        y0 = jnp.zeros((x.shape[0], out_pad), jnp.float32)
        y = jax.lax.fori_loop(0, n_chunks, body, y0, unroll=True)

    y = y + b2_ref[...].astype(jnp.float32)
    o_ref[...] = y.astype(o_ref.dtype)


def mlp_module_forward(x, w1, b1, w2, b2, *, normalize=True, out_dim=None,
                       row_tile=512, hidden_chunk=1024):
    """x: (..., input_dim). w1: (input_dim, hidden). w2: (hidden, out[_pad]).

    If w2/b2 were pre-padded with pad_output_params(), pass the true out_dim.
    row_tile: sweep 512 -> 1024 on v5e/v6e for small weights (not on v7x).
    """
    orig_shape = x.shape
    in_dim = orig_shape[-1]
    hidden_dim = w1.shape[1]

    if out_dim is None:
        out_dim = w2.shape[1]
    if w2.shape[1] % 128 != 0:
        # Prefer pre-padding at init (pad_output_params) to avoid this per-call
        # HBM pass; done here only as a fallback.
        w2, b2, _ = pad_output_params(w2, b2)
    out_pad = w2.shape[1]

    x2d = x.reshape(-1, in_dim)
    n_rows = x2d.shape[0]

    # Row tile: dtype-aware sublane rounding, big enough for MXU occupancy.
    sub = _sublane_multiple(x.dtype)
    rt = min(row_tile, _round_up(n_rows, sub))
    # Guarantee >= 2 grid rows when there is enough work so v7x's second
    # TensorCore is not idle on the "parallel" axis (harmless on 1-TC chips).
    if n_rows > 256 and pl.cdiv(n_rows, rt) < 2:
        rt = max(_round_up(pl.cdiv(n_rows, 2), 128), sub)
    grid_rows = pl.cdiv(n_rows, rt)  # ragged last block handled by Pallas

    # In-kernel hidden chunk size (only if it divides evenly).
    if hidden_dim > hidden_chunk and hidden_dim % hidden_chunk == 0:
        ck = hidden_chunk
    else:
        ck = hidden_dim
    # TODO(synk): when hidden_dim is not a multiple of hidden_chunk, pick the
    # largest 128-multiple divisor instead of falling back to the full width.

    b1_2d = b1.reshape(1, hidden_dim)
    b2_2d = b2.reshape(1, out_pad)

    kernel = functools.partial(_mlp_kernel, normalize=normalize,
                               hidden_chunk=ck)

    flops = 2 * n_rows * (in_dim * hidden_dim + hidden_dim * out_pad)
    bytes_accessed = (
        x2d.size * x2d.dtype.itemsize
        + w1.size * w1.dtype.itemsize
        + b1_2d.size * b1_2d.dtype.itemsize
        + w2.size * w2.dtype.itemsize
        + b2_2d.size * b2_2d.dtype.itemsize
        + n_rows * out_pad * x.dtype.itemsize
    )
    cost = pl.CostEstimate(
        flops=flops,
        transcendentals=n_rows if normalize else 0,
        bytes_accessed=bytes_accessed,
    )

    # Grid-invariant operands: single-buffered (their block index never moves).
    invariant = pl.Buffered(1)

    cp_kwargs = dict(dimension_semantics=("parallel",))
    vlim = _vmem_limit_bytes()
    if vlim is not None:
        cp_kwargs["vmem_limit_bytes"] = vlim

    out = pl.pallas_call(
        kernel,
        out_shape=jax.ShapeDtypeStruct((n_rows, out_pad), x.dtype),
        grid_spec=pltpu.PrefetchScalarGridSpec(
            num_scalar_prefetch=0,
            grid=(grid_rows,),
            in_specs=[
                pl.BlockSpec((rt, in_dim), lambda i: (i, 0)),
                pl.BlockSpec((in_dim, hidden_dim), lambda i: (0, 0),
                             pipeline_mode=invariant),
                pl.BlockSpec((1, hidden_dim), lambda i: (0, 0),
                             pipeline_mode=invariant),
                pl.BlockSpec((hidden_dim, out_pad), lambda i: (0, 0),
                             pipeline_mode=invariant),
                pl.BlockSpec((1, out_pad), lambda i: (0, 0),
                             pipeline_mode=invariant),
            ],
            out_specs=pl.BlockSpec((rt, out_pad), lambda i: (i, 0)),
        ),
        compiler_params=pltpu.CompilerParams(**cp_kwargs),
        cost_estimate=cost,
    )(x2d, w1, b1_2d, w2, b2_2d)

    if out_pad != out_dim:
        out = out[:, :out_dim]
    return out.reshape(*orig_shape[:-1], out_dim)


def _reference(x, w1, b1, w2, b2, normalize=True):
    xf = x.astype(jnp.float32)
    if normalize:
        norm = jnp.sqrt(jnp.sum(xf * xf, axis=-1, keepdims=True))
        xf = xf / jnp.maximum(norm, 1e-12)
    h = jnp.maximum(
        jnp.dot(xf, w1, precision=jax.lax.Precision.HIGHEST) + b1, 0.0)
    return jnp.dot(h, w2, precision=jax.lax.Precision.HIGHEST) + b2


if __name__ == "__main__":
    # Small shapes consistent with the module's forward.
    batch, seq, input_dim, hidden_dim, output_dim = 2, 8, 32, 64, 32

    key = jax.random.PRNGKey(0)
    kx, kw1, kb1, kw2, kb2 = jax.random.split(key, 5)

    x = jax.random.normal(kx, (batch, seq, input_dim), dtype=jnp.float32)

    # Deterministic parameter init (Kaiming-uniform-ish bounds, like nn.Linear).
    bound1 = 1.0 / (input_dim ** 0.5)
    w1 = jax.random.uniform(kw1, (input_dim, hidden_dim), jnp.float32,
                            minval=-bound1, maxval=bound1)
    b1 = jax.random.uniform(kb1, (hidden_dim,), jnp.float32,
                            minval=-bound1, maxval=bound1)
    bound2 = 1.0 / (hidden_dim ** 0.5)
    w2 = jax.random.uniform(kw2, (hidden_dim, output_dim), jnp.float32,
                            minval=-bound2, maxval=bound2)
    b2 = jax.random.uniform(kb2, (output_dim,), jnp.float32,
                            minval=-bound2, maxval=bound2)

    # Pre-pad the output projection once (init-time), not inside the forward.
    w2p, b2p, out_dim = pad_output_params(w2, b2)

    out = mlp_module_forward(x, w1, b1, w2p, b2p, normalize=True,
                             out_dim=out_dim)
    out = jax.block_until_ready(out)

    ref = _reference(x, w1, b1, w2, b2, normalize=True)
    assert out.shape == (batch, seq, output_dim)
    assert jnp.allclose(out, ref, atol=5e-5, rtol=5e-5)

    print("KERNEL_OK")
</pallas_src>

<mosaic_0001>
module attributes {stable_mosaic.version = 11 : i64} {
  func.func @_mlp_kernel(%arg0: i32, %arg1: memref<16x32xf32, #tpu.memory_space<vmem>>, %arg2: memref<32x64xf32, #tpu.memory_space<vmem>>, %arg3: memref<1x64xf32, #tpu.memory_space<vmem>>, %arg4: memref<64x128xf32, #tpu.memory_space<vmem>>, %arg5: memref<1x128xf32, #tpu.memory_space<vmem>>, %arg6: memref<16x128xf32, #tpu.memory_space<vmem>>) attributes {dimension_semantics = [#tpu.dimension_semantics<parallel>], iteration_bounds = array<i64: 1>, scalar_prefetch = 0 : i64, scratch_operands = 0 : i64, tpu.core_type = #tpu.core_type<tc>, window_params = [{transform_indices = @transform_0, window_bounds = array<i64: 16, 32>}, {pipeline_mode = #tpu.pipeline_mode<synchronous>, transform_indices = @transform_1, window_bounds = array<i64: 32, 64>}, {pipeline_mode = #tpu.pipeline_mode<synchronous>, transform_indices = @transform_2, window_bounds = array<i64: 1, 64>}, {pipeline_mode = #tpu.pipeline_mode<synchronous>, transform_indices = @transform_3, window_bounds = array<i64: 64, 128>}, {pipeline_mode = #tpu.pipeline_mode<synchronous>, transform_indices = @transform_4, window_bounds = array<i64: 1, 128>}, {transform_indices = @transform_5, window_bounds = array<i64: 16, 128>}]} {
    %c0 = arith.constant 0 : index
    %c0_0 = arith.constant 0 : index
    %0 = vector.load %arg1[%c0, %c0_0] : memref<16x32xf32, #tpu.memory_space<vmem>>, vector<16x32xf32>
    %1 = arith.mulf %0, %0 : vector<16x32xf32>
    %cst = arith.constant dense<0.000000e+00> : vector<16xf32>
    %2 = vector.multi_reduction <add>, %1, %cst [1] : vector<16x32xf32> to vector<16xf32>
    %3 = vector.shape_cast %2 : vector<16xf32> to vector<16x1xf32>
    %cst_1 = arith.constant 1.000000e-24 : f32
    %4 = vector.broadcast %cst_1 : f32 to vector<16x1xf32>
    %5 = arith.maximumf %3, %4 : vector<16x1xf32>
    %6 = math.rsqrt %5 : vector<16x1xf32>
    %7 = vector.broadcast %6 : vector<16x1xf32> to vector<16x32xf32>
    %8 = arith.mulf %0, %7 : vector<16x32xf32>
    %c0_2 = arith.constant 0 : index
    %c0_3 = arith.constant 0 : index
    %9 = vector.load %arg2[%c0_2, %c0_3] : memref<32x64xf32, #tpu.memory_space<vmem>>, vector<32x64xf32>
    %cst_4 = arith.constant dense<0.000000e+00> : vector<16x64xf32>
    %10 = tpu.matmul %8, %9, %cst_4 {dimension_numbers = #tpu.dot_dimension_numbers<[1], [0], [0], [1], [0, 0, 1, 1], [], []>} : vector<16x32xf32>, vector<32x64xf32>, vector<16x64xf32> -> vector<16x64xf32>
    %c0_5 = arith.constant 0 : index
    %c0_6 = arith.constant 0 : index
    %11 = vector.load %arg3[%c0_5, %c0_6] : memref<1x64xf32, #tpu.memory_space<vmem>>, vector<1x64xf32>
    %12 = vector.broadcast %11 : vector<1x64xf32> to vector<16x64xf32>
    %13 = arith.addf %10, %12 : vector<16x64xf32>
    %cst_7 = arith.constant 0.000000e+00 : f32
    %14 = vector.broadcast %cst_7 : f32 to vector<16x64xf32>
    %15 = arith.maximumf %13, %14 : vector<16x64xf32>
    %c0_8 = arith.constant 0 : index
    %c0_9 = arith.constant 0 : index
    %16 = vector.load %arg4[%c0_8, %c0_9] : memref<64x128xf32, #tpu.memory_space<vmem>>, vector<64x128xf32>
    %cst_10 = arith.constant dense<0.000000e+00> : vector<16x128xf32>
    %17 = tpu.matmul %15, %16, %cst_10 {dimension_numbers = #tpu.dot_dimension_numbers<[1], [0], [0], [1], [0, 0, 1, 1], [], []>} : vector<16x64xf32>, vector<64x128xf32>, vector<16x128xf32> -> vector<16x128xf32>
    %c0_11 = arith.constant 0 : index
    %c0_12 = arith.constant 0 : index
    %18 = vector.load %arg5[%c0_11, %c0_12] : memref<1x128xf32, #tpu.memory_space<vmem>>, vector<1x128xf32>
    %19 = vector.broadcast %18 : vector<1x128xf32> to vector<16x128xf32>
    %20 = arith.addf %17, %19 : vector<16x128xf32>
    %c0_13 = arith.constant 0 : index
    %c0_14 = arith.constant 0 : index
    %21 = vector.load %arg6[%c0_13, %c0_14] : memref<16x128xf32, #tpu.memory_space<vmem>>, vector<16x128xf32>
    tpu.vector_store %arg6[%c0_13, %c0_14], %20 {strides = array<i32>} : memref<16x128xf32, #tpu.memory_space<vmem>>, vector<16x128xf32>,
    return
  }
  func.func @transform_0(%arg0: i32) -> (i32, i32) {
    %c0_i32 = arith.constant 0 : i32
    %c0_i32_0 = arith.constant 0 : i32
    return %arg0, %c0_i32 : i32, i32
  }
  func.func @transform_1(%arg0: i32) -> (i32, i32) {
    %c0_i32 = arith.constant 0 : i32
    %c0_i32_0 = arith.constant 0 : i32
    %c0_i32_1 = arith.constant 0 : i32
    return %c0_i32, %c0_i32_0 : i32, i32
  }
  func.func @transform_2(%arg0: i32) -> (i32, i32) {
    %c0_i32 = arith.constant 0 : i32
    %c0_i32_0 = arith.constant 0 : i32
    %c0_i32_1 = arith.constant 0 : i32
    return %c0_i32, %c0_i32_0 : i32, i32
  }
  func.func @transform_3(%arg0: i32) -> (i32, i32) {
    %c0_i32 = arith.constant 0 : i32
    %c0_i32_0 = arith.constant 0 : i32
    %c0_i32_1 = arith.constant 0 : i32
    return %c0_i32, %c0_i32_0 : i32, i32
  }
  func.func @transform_4(%arg0: i32) -> (i32, i32) {
    %c0_i32 = arith.constant 0 : i32
    %c0_i32_0 = arith.constant 0 : i32
    %c0_i32_1 = arith.constant 0 : i32
    return %c0_i32, %c0_i32_0 : i32, i32
  }
  func.func @transform_5(%arg0: i32) -> (i32, i32) {
    %c0_i32 = arith.constant 0 : i32
    %c0_i32_0 = arith.constant 0 : i32
    return %arg0, %c0_i32 : i32, i32
  }
}

</mosaic_0001>

<llo_original>
// kernel: tpu_custom_call.1
$region0: #{tpu_custom_call.1}
  #allocation0 [shape = 'u32[]', space=smem, size = 0x4, offset = 0x4, fixed_abs, tag = 'smem constant byte address 0x4 - core index']
  #allocation1 [shape = 'u32[144,128]{1,0:T(1,128)}', space=vmem, size = 0x12000, scoped, tag = 'internal scratch']
  %s0 = inlined_call_operand.hbm [shape: f32[16,32], index: 0, kind: input, shape index: {}]
  %s1 = inlined_call_operand.hbm [shape: f32[32,64], index: 1, kind: input, shape index: {}]
  %s2 = inlined_call_operand.vmem [shape: f32[1,64], index: 2, kind: input, shape index: {}]
  %s3 = inlined_call_operand.hbm [shape: f32[64,128], index: 3, kind: input, shape index: {}]
  %s4 = inlined_call_operand.vmem [shape: f32[1,128], index: 4, kind: input, shape index: {}]
  %s5 = inlined_call_operand.hbm [shape: f32[16,128], index: 5, kind: output, shape index: {}]
  %s6 = sld [smem:[#allocation0]]
  $region42: #{tpu_custom_call.1} parent=0
    _
  %s8 = ssub.s32 1, %s6
  %s9 = scalar_select 0, %s8, %s6
  $region1: #{tpu_custom_call.1} parent=0
    #allocation2 [shape = 'u8[8192]{0}', space=vmem, size = 0x2000, scoped, tag = 'input window, operand 0, single buffered']
    #allocation3 [shape = 's32[1]{0}', space=sflag, size = 0x4, scoped, tag = 'scoped memory for tpu_custom_call.1']
    #allocation4 [shape = 's32[1]{0}', space=sflag, size = 0x4, scoped, tag = 'scoped memory for tpu_custom_call.1']
    #allocation5 [shape = 'u8[16384]{0}', space=vmem, size = 0x4000, scoped, tag = 'input window, operand 1, single buffered']
    #allocation6 [shape = 's32[1]{0}', space=sflag, size = 0x4, scoped, tag = 'scoped memory for tpu_custom_call.1']
    #allocation7 [shape = 'u8[32768]{0}', space=vmem, size = 0x8000, scoped, tag = 'input window, operand 3, single buffered']
    #allocation8 [shape = 'u8[8192]{0}', space=vmem, size = 0x2000, scoped, tag = 'output window, operand 0, single buffered']
    %10 = vsyncpa [#allocation3], 0
    %11 = vsyncpa [#allocation6], 0
    %12 = vsyncpa [#allocation4], 0
    // Predicated region
    $region2: #{tpu_custom_call.1} parent=1 // pred_check
      _
    $region3: #{tpu_custom_call.1} parent=1 // pred_check_branch
      %14 = sbr.rel (0) target = $region5
    $region4: #{tpu_custom_call.1} parent=1 // pred_region
      %s16 = ssub.s32 256, 256
      %17 = vsyncadd [#allocation3], %s16
      %s18 = sshll.u32 [#allocation2], 4
      %s19 = int_to_ptr.vmem [resolvable:$true] %s18
      %24 = dma.hbm_to_vmem [thread:$0]  %s0, 256, %s19, [#allocation3], 128, 128, 8
    $region5: #{tpu_custom_call.1} parent=1 // pred_fallthru
      _
    // Predicated region
    $region6: #{tpu_custom_call.1} parent=1 // pred_check
      _
    $region7: #{tpu_custom_call.1} parent=1 // pred_check_branch
      %26 = sbr.rel (0) target = $region9
    $region8: #{tpu_custom_call.1} parent=1 // pred_region
      %s28 = ssub.s32 512, 512
      %29 = vsyncadd [#allocation6], %s28
      %s30 = sshll.u32 [#allocation5], 4
      %s31 = int_to_ptr.vmem [resolvable:$true] %s30
      %36 = dma.hbm_to_vmem [thread:$0]  %s1, 512, %s31, [#allocation6], 128, 128, 8
    $region9: #{tpu_custom_call.1} parent=1 // pred_fallthru
      _
    // Predicated region
    $region10: #{tpu_custom_call.1} parent=1 // pred_check
      _
    $region11: #{tpu_custom_call.1} parent=1 // pred_check_branch
      %38 = sbr.rel (0) target = $region13
    $region12: #{tpu_custom_call.1} parent=1 // pred_region
      _
    $region13: #{tpu_custom_call.1} parent=1 // pred_fallthru
      _
    // Predicated region
    $region14: #{tpu_custom_call.1} parent=1 // pred_check
      _
    $region15: #{tpu_custom_call.1} parent=1 // pred_check_branch
      %40 = sbr.rel (0) target = $region17
    $region16: #{tpu_custom_call.1} parent=1 // pred_region
      %s42 = ssub.s32 1024, 1024
      %43 = vsyncadd [#allocation6], %s42
      %s44 = sshll.u32 [#allocation7], 4
      %s45 = int_to_ptr.vmem [resolvable:$true] %s44
      %50 = dma.hbm_to_vmem [thread:$0]  %s3, 1024, %s45, [#allocation6], 128, 128, 8
    $region17: #{tpu_custom_call.1} parent=1 // pred_fallthru
      _
    // Predicated region
    $region18: #{tpu_custom_call.1} parent=1 // pred_check
      _
    $region19: #{tpu_custom_call.1} parent=1 // pred_check_branch
      %52 = sbr.rel (0) target = $region21
    $region20: #{tpu_custom_call.1} parent=1 // pred_region
      _
    $region21: #{tpu_custom_call.1} parent=1 // pred_fallthru
      _
    // Predicated region
    $region22: #{tpu_custom_call.1} parent=1 // pred_check
      _
    $region23: #{tpu_custom_call.1} parent=1 // pred_check_branch
      %54 = sbr.rel (0) target = $region25
    $region24: #{tpu_custom_call.1} parent=1 // pred_region
      %55 = dma.done [#allocation3], 256
    $region25: #{tpu_custom_call.1} parent=1 // pred_fallthru
      _
    // Predicated region
    $region26: #{tpu_custom_call.1} parent=1 // pred_check
      _
    $region27: #{tpu_custom_call.1} parent=1 // pred_check_branch
      %57 = sbr.rel (0) target = $region29
    $region28: #{tpu_custom_call.1} parent=1 // pred_region
      %58 = dma.done [#allocation6], 512
    $region29: #{tpu_custom_call.1} parent=1 // pred_fallthru
      _
    // Predicated region
    $region30: #{tpu_custom_call.1} parent=1 // pred_check
      _
    $region31: #{tpu_custom_call.1} parent=1 // pred_check_branch
      %60 = sbr.rel (0) target = $region33
    $region32: #{tpu_custom_call.1} parent=1 // pred_region
      %61 = dma.done [#allocation6], 1024
    $region33: #{tpu_custom_call.1} parent=1 // pred_fallthru
      _
    %v62 = vld [vmem:[#allocation2] sm:$0xff]
    %v63 = vld [vmem:[#allocation2 + $0x8] sm:$0xff]
    %v64 = vmul.f32 %v62, %v62
    %v65 = vmul.f32 %v63, %v63
    %vm66 = vcmask 261120
    %v67 = vsel %vm66, %v64, 0.0
    %68 = vadd.xlane.f32.xlu0 %v67
    %v69 = vpop.xlane.xlu0 %68
    %v70 = vsel %vm66, %v65, 0.0
    %71 = vadd.xlane.f32.xlu0 %v70
    %v72 = vpop.xlane.xlu0 %71
    %v73 = vmax.f32 %v69, 1e-24
    %v74 = vmax.f32 %v72, 1e-24
    %v75 = vrsqrt.pop %v73
    %v76 = vrsqrt.pop %v74
    %v77 = vmul.f32 %v62, %v75
    %v78 = vmul.f32 %v63, %v76
    %v79 = vld [vmem:[#allocation5] sm:$0xff]
    %v80 = vld [vmem:[#allocation5 + $0x8] sm:$0xff]
    %v81 = vld [vmem:[#allocation5 + $0x10] sm:$0xff]
    %v82 = vld [vmem:[#allocation5 + $0x18] sm:$0xff]
    %v83 = vld [vmem:[%s2] sm:$0x1]
    %v85 = vlaneseq
    %v86 = vshrl.u32 %v85, 7
    %v87 = vsub.s32 0, %v86
    %v88 = vrot.slane %v83, %v87
    %v91 = vsel %vm66, %v77, 0
    %v94 = vsel %vm66, %v78, 0
    %96 = vmatprep.subr.mxu0 0.0
    %97 = vmatpush1.msra.mxu0 %v79
    %98 = vmatprep.subr.mxu0 0.0
    %99 = vmatpush1.msra.mxu0 %v80
    %100 = vmatprep.subr.mxu0 0.0
    %101 = vmatpush1.msra.mxu0 %v81
    %102 = vmatprep.subr.mxu0 0.0
    %103 = vmatpush1.msra.mxu0 %v82
    %104 = vmatprep.subr.mxu0 0.0
    %105 = vmatpush1.msra.mxu0 0.0
    %106 = vmatprep.subr.mxu0 0.0
    %107 = vmatpush1.msra.mxu0 0.0
    %108 = vmatprep.subr.mxu0 0.0
    %109 = vmatpush1.msra.mxu0 0.0
    %110 = vmatprep.subr.mxu0 0.0
    %111 = vmatpush1.msra.mxu0 0.0
    %112 = vmatprep.subr.mxu0 0.0
    %113 = vmatpush1.msra.mxu0 0.0
    %114 = vmatprep.subr.mxu0 0.0
    %115 = vmatpush1.msra.mxu0 0.0
    %116 = vmatprep.subr.mxu0 0.0
    %117 = vmatpush1.msra.mxu0 0.0
    %118 = vmatprep.subr.mxu0 0.0
    %119 = vmatpush1.msra.mxu0 0.0
    %120 = vmatprep.subr.mxu0 0.0
    %121 = vmatpush1.msra.mxu0 0.0
    %122 = vmatprep.subr.mxu0 0.0
    %123 = vmatpush1.msra.mxu0 0.0
    %124 = vmatprep.subr.mxu0 0.0
    %125 = vmatpush1.msra.mxu0 0.0
    %126 = vmatprep.subr.mxu0 0.0
    %127 = vmatpush1.msra.mxu0 0.0
    %128 = vmatprep.subr.mxu0 0.0
    %129 = vmatpush1.msra.mxu0 0.0
    %130 = vmatprep.subr.mxu0 0.0
    %131 = vmatpush1.msra.mxu0 0.0
    %132 = vmatprep.subr.mxu0 0.0
    %133 = vmatpush1.msra.mxu0 0.0
    %134 = vmatprep.subr.mxu0 0.0
    %135 = vmatpush1.msra.mxu0 0.0
    %136 = vmatprep.subr.mxu0 0.0
    %137 = vmatpush1.msra.mxu0 0.0
    %138 = vmatprep.subr.mxu0 0.0
    %139 = vmatpush1.msra.mxu0 0.0
    %140 = vmatprep.subr.mxu0 0.0
    %141 = vmatpush1.msra.mxu0 0.0
    %142 = vmatprep.subr.mxu0 0.0
    %143 = vmatpush1.msra.mxu0 0.0
    %144 = vmatprep.subr.mxu0 0.0
    %145 = vmatpush1.msra.mxu0 0.0
    %146 = vmatprep.subr.mxu0 0.0
    %147 = vmatpush1.msra.mxu0 0.0
    %148 = vmatprep.subr.mxu0 0.0
    %149 = vmatpush1.msra.mxu0 0.0
    %150 = vmatprep.subr.mxu0 0.0
    %151 = vmatpush1.msra.mxu0 0.0
    %152 = vmatprep.subr.mxu0 0.0
    %153 = vmatpush1.msra.mxu0 0.0
    %154 = vmatprep.subr.mxu0 0.0
    %155 = vmatpush1.msra.mxu0 0.0
    %156 = vmatprep.subr.mxu0 0.0
    %157 = vmatpush1.msra.mxu0 0.0
    %158 = vmatprep.subr.mxu0 0.0
    %159 = vmatpush1.msra.mxu0 0.0
    %160 = vmatprep.mubr.f32.mxu0 0.0
    %161 = vmatmul.mubr.f32.gmra.mrb[0].mxu0 %v91
    %v162 = vpop.f32.mrb[0].mxu0
    %v163 = vadd.f32 %v88, %v162
    %v164 = vpop.f32.mrb[0].mxu0
    %165 = vmatprep.mubr.f32.mxu0 0.0
    %166 = vmatmul.mubr.f32.gmra.mrb[0].mxu0 %v94
    %v167 = vpop.f32.mrb[0].mxu0
    %v168 = vadd.f32 %v88, %v167
    %v169 = vpop.f32.mrb[0].mxu0
    %170 = vdwg.mxu0
    %v171 = vmax.f32 %v163, 0.0
    %v172 = vmax.f32 %v168, 0.0
    %v173 = vld [vmem:[#allocation7] sm:$0xff]
    %v174 = vld [vmem:[#allocation7 + $0x8] sm:$0xff]
    %v175 = vld [vmem:[#allocation7 + $0x10] sm:$0xff]
    %v176 = vld [vmem:[#allocation7 + $0x18] sm:$0xff]
    %v177 = vld [vmem:[#allocation7 + $0x20] sm:$0xff]
    %v178 = vld [vmem:[#allocation7 + $0x28] sm:$0xff]
    %v179 = vld [vmem:[#allocation7 + $0x30] sm:$0xff]
    %v180 = vld [vmem:[#allocation7 + $0x38] sm:$0xff]
    %v181 = vld [vmem:[%s4] sm:$0x1]
    %v183 = vlaneseq
    %v184 = vshrl.u32 %v183, 7
    %v185 = vsub.s32 0, %v184
    %v186 = vrot.slane %v181, %v185
    %vm188 = vcmask 523264
    %v190 = vsel %vm188, %v171, 0
    %v193 = vsel %vm188, %v172, 0
    %195 = vmatprep.subr.mxu0 0.0
    %196 = vmatpush1.msra.mxu0 %v173
    %197 = vmatprep.subr.mxu0 0.0
    %198 = vmatpush1.msra.mxu0 %v174
    %199 = vmatprep.subr.mxu0 0.0
    %200 = vmatpush1.msra.mxu0 %v175
    %201 = vmatprep.subr.mxu0 0.0
    %202 = vmatpush1.msra.mxu0 %v176
    %203 = vmatprep.subr.mxu0 0.0
    %204 = vmatpush1.msra.mxu0 %v177
    %205 = vmatprep.subr.mxu0 0.0
    %206 = vmatpush1.msra.mxu0 %v178
    %207 = vmatprep.subr.mxu0 0.0
    %208 = vmatpush1.msra.mxu0 %v179
    %209 = vmatprep.subr.mxu0 0.0
    %210 = vmatpush1.msra.mxu0 %v180
    %211 = vmatprep.subr.mxu0 0.0
    %212 = vmatpush1.msra.mxu0 0.0
    %213 = vmatprep.subr.mxu0 0.0
    %214 = vmatpush1.msra.mxu0 0.0
    %215 = vmatprep.subr.mxu0 0.0
    %216 = vmatpush1.msra.mxu0 0.0
    %217 = vmatprep.subr.mxu0 0.0
    %218 = vmatpush1.msra.mxu0 0.0
    %219 = vmatprep.subr.mxu0 0.0
    %220 = vmatpush1.msra.mxu0 0.0
    %221 = vmatprep.subr.mxu0 0.0
    %222 = vmatpush1.msra.mxu0 0.0
    %223 = vmatprep.subr.mxu0 0.0
    %224 = vmatpush1.msra.mxu0 0.0
    %225 = vmatprep.subr.mxu0 0.0
    %226 = vmatpush1.msra.mxu0 0.0
    %227 = vmatprep.subr.mxu0 0.0
    %228 = vmatpush1.msra.mxu0 0.0
    %229 = vmatprep.subr.mxu0 0.0
    %230 = vmatpush1.msra.mxu0 0.0
    %231 = vmatprep.subr.mxu0 0.0
    %232 = vmatpush1.msra.mxu0 0.0
    %233 = vmatprep.subr.mxu0 0.0
    %234 = vmatpush1.msra.mxu0 0.0
    %235 = vmatprep.subr.mxu0 0.0
    %236 = vmatpush1.msra.mxu0 0.0
    %237 = vmatprep.subr.mxu0 0.0
    %238 = vmatpush1.msra.mxu0 0.0
    %239 = vmatprep.subr.mxu0 0.0
    %240 = vmatpush1.msra.mxu0 0.0
    %241 = vmatprep.subr.mxu0 0.0
    %242 = vmatpush1.msra.mxu0 0.0
    %243 = vmatprep.subr.mxu0 0.0
    %244 = vmatpush1.msra.mxu0 0.0
    %245 = vmatprep.subr.mxu0 0.0
    %246 = vmatpush1.msra.mxu0 0.0
    %247 = vmatprep.subr.mxu0 0.0
    %248 = vmatpush1.msra.mxu0 0.0
    %249 = vmatprep.subr.mxu0 0.0
    %250 = vmatpush1.msra.mxu0 0.0
    %251 = vmatprep.subr.mxu0 0.0
    %252 = vmatpush1.msra.mxu0 0.0
    %253 = vmatprep.subr.mxu0 0.0
    %254 = vmatpush1.msra.mxu0 0.0
    %255 = vmatprep.subr.mxu0 0.0
    %256 = vmatpush1.msra.mxu0 0.0
    %257 = vmatprep.subr.mxu0 0.0
    %258 = vmatpush1.msra.mxu0 0.0
    %259 = vmatprep.mubr.f32.mxu0 0.0
    %260 = vmatmul.mubr.f32.gmra.mrb[0].mxu0 %v190
    %v261 = vpop.f32.mrb[0].mxu0
    %v262 = vadd.f32 %v186, %v261
    %v263 = vpop.f32.mrb[0].mxu0
    %264 = vmatprep.mubr.f32.mxu0 0.0
    %265 = vmatmul.mubr.f32.gmra.mrb[0].mxu0 %v193
    %v266 = vpop.f32.mrb[0].mxu0
    %v267 = vadd.f32 %v186, %v266
    %v268 = vpop.f32.mrb[0].mxu0
    %269 = vdwg.mxu0
    %270 = vst [vmem:[#allocation8] sm:$0xff] %v262
    %271 = vst [vmem:[#allocation8 + $0x8] sm:$0xff] %v267
    // Predicated region
    $region34: #{tpu_custom_call.1} parent=1 // pred_check
      _
    $region35: #{tpu_custom_call.1} parent=1 // pred_check_branch
      %273 = sbr.rel (0) target = $region37
    $region36: #{tpu_custom_call.1} parent=1 // pred_region
      %s275 = ssub.s32 256, 256
      %276 = vsyncadd [#allocation4], %s275
      %s277 = sshll.u32 [#allocation8], 4
      %s278 = int_to_ptr.vmem [resolvable:$true] %s277
      %283 = dma.vmem_to_hbm [thread:$0]  %s278, 256, %s5, [#allocation4], 128, 128, 8
    $region37: #{tpu_custom_call.1} parent=1 // pred_fallthru
      _
    // Predicated region
    $region38: #{tpu_custom_call.1} parent=1 // pred_check
      _
    $region39: #{tpu_custom_call.1} parent=1 // pred_check_branch
      %285 = sbr.rel (0) target = $region41
    $region40: #{tpu_custom_call.1} parent=1 // pred_region
      %286 = dma.done [#allocation4], 256
    $region41: #{tpu_custom_call.1} parent=1 // pred_fallthru
      _
    %287 = vsyncpa [#allocation3], 1
    %288 = vsyncpa [#allocation6], 1
    %289 = vsyncpa [#allocation4], 1

</llo_original>
